<compile_context>
chip_gen: v5e
topology: v5e:2x2
jax: 0.10.0
libtpu: 0.0.40
codegen_flags: <defaults>
</compile_context>

<pallas_src>
import functools

import numpy as np

import jax
import jax.numpy as jnp
from jax.experimental import pallas as pl
from jax.experimental.pallas import tpu as pltpu

LATENT_DIM = 10
MXU_DTYPE = jnp.bfloat16   # set to jnp.float32 for closer fp32 parity with PyTorch


def _vmem():
    return pl.BlockSpec(memory_space=pltpu.MemorySpace.VMEM)


# ---------------------------------------------------------------------------
# Fused forward kernel
# ---------------------------------------------------------------------------
def _mlp_ae_kernel(taps_ref, sel_ref, wslab_ref, fslab_ref, out_ref):
    f32 = jnp.float32
    batch = out_ref.shape[0]
    mxu_dt = wslab_ref.dtype

    fs = fslab_ref[...]                       # (5, 128) f32
    b1 = fs[0:1, :]                           # conv1 bias (64 real + 64 zero)
    b2 = fs[1:2, :]                           # conv2 bias (48 real + 80 zero)
    bfc1 = fs[2:3, :]                         # fc1 bias (128)
    whead = fs[3:4, :]                        # composed Wfc2 @ Wmlp head row
    bhead = fs[4:5, 0:1]                      # composed head bias (scalar)

    # ---- conv1 (1->64, 3x3, s=2, p=1) + ReLU + MaxPool2x2  (ONE MXU GEMM) ---
    # taps: (B*49, 36); column q*9+t = padded-input pixel feeding pool quadrant
    # q, conv tap t.  W1bd is block-diagonal so one GEMM yields all 4 quadrant
    # values side by side in 128-aligned lane blocks (lanes 64..127 of each
    # block are exactly zero).  relu(max) == max(relu) and bias is constant
    # across quadrants, so pooling commutes with bias+ReLU.
    w1bd = wslab_ref[0:36, :]                                        # (36, 512)
    c1 = jnp.dot(taps_ref[...], w1bd, preferred_element_type=f32)    # (B*49,512)
    q01 = jnp.maximum(c1[:, 0:128], c1[:, 128:256])
    q23 = jnp.maximum(c1[:, 256:384], c1[:, 384:512])
    pool1 = jnp.maximum(jnp.maximum(q01, q23) + b1, 0.0)             # (B*49,128)
    p1 = pool1.astype(mxu_dt)        # lanes 64..127 stay exactly zero

    # ---- conv2 (64->48, 2x2, s=2, p=1) + ReLU + MaxPool2x2 (TWO MXU GEMMs) --
    # Gather (in-kernel im2col) as one GEMM over a 0/1 selection matrix whose
    # rows are tap-major / pool-offset-major, then one GEMM against the
    # lane-block-diagonal conv2 weight; per-tap partial sums occupy disjoint
    # tile-aligned (row-block, lane-block) regions -> 3 VPU adds to combine.
    g = jnp.dot(sel_ref[...], p1, preferred_element_type=f32)        # (64B, 128)
    w2w = wslab_ref[48:176, :]                                       # (128, 512)
    h = jnp.dot(g.astype(mxu_dt), w2w, preferred_element_type=f32)   # (64B, 512)
    nt = 16 * batch
    conv2 = (h[0:nt, 0:128] + h[nt:2 * nt, 128:256]
             + h[2 * nt:3 * nt, 256:384] + h[3 * nt:4 * nt, 384:512])
    conv2 = jnp.maximum(conv2 + b2, 0.0)                             # (16B, 128)
    nd = 4 * batch
    pool2 = jnp.maximum(
        jnp.maximum(conv2[0:nd], conv2[nd:2 * nd]),
        jnp.maximum(conv2[2 * nd:3 * nd], conv2[3 * nd:4 * nd]))     # (4B, 128)
    # pool2 row = (2x2 spatial position p)*B + b; lanes 48..127 are zero.

    # ---- Flatten (NCHW) + Linear(192,128) + ReLU  (ONE MXU GEMM) ------------
    # Wfc1alt[c, p*128 + o] = fc1_w[o, c*4 + p]: the flatten permutation is
    # folded into the weight; the spatial sum is 4 aligned slices + 3 adds.
    wfc1 = wslab_ref[176:304, :]                                     # (128, 512)
    y = jnp.dot(pool2.astype(mxu_dt), wfc1, preferred_element_type=f32)  # (4B,512)
    fc1 = (y[0:batch, 0:128] + y[batch:2 * batch, 128:256]
           + y[2 * batch:3 * batch, 256:384] + y[3 * batch:4 * batch, 384:512])
    fc1 = jnp.maximum(fc1 + bfc1, 0.0)                               # (B, 128) f32

    # ---- Linear(128,10) -> Linear(10,1) (pre-composed) -> Softmax(dim=1) ----
    # No nonlinearity between fc2 and the head, so they are composed at prepare
    # time; a single f32 lane reduction replaces two M=2/N<=10 MXU launches.
    logit = jnp.sum(fc1 * whead, axis=-1, keepdims=True) + bhead     # (B, 1)
    # Softmax over a width-1 axis is identically 1.0 (matches PyTorch); the
    # math is kept to preserve the module's semantics.
    m = jnp.max(logit, axis=-1, keepdims=True)
    e = jnp.exp(logit - m)
    yout = e / jnp.sum(e, axis=-1, keepdims=True)                    # (B, 1)
    # Lane-dense output slab; wrapper slices back to (B, 1).
    out_ref[...] = jnp.broadcast_to(yout, out_ref.shape).astype(out_ref.dtype)


# ---------------------------------------------------------------------------
# Constant index / selection builders (host-side, cached, trace-time constants)
# ---------------------------------------------------------------------------
@functools.lru_cache(maxsize=None)
def _conv1_tap_indices():
    """(49, 36) flat indices into the zero-padded 30x30 image; col = q*9 + t."""
    idx = np.zeros((49, 36), np.int32)
    for ph in range(7):
        for pw in range(7):
            s = ph * 7 + pw
            for dh in range(2):
                for dw in range(2):
                    q = dh * 2 + dw
                    for ki in range(3):
                        for kj in range(3):
                            t = ki * 3 + kj
                            r = 4 * ph + 2 * dh + ki
                            c = 4 * pw + 2 * dw + kj
                            idx[s, q * 9 + t] = r * 30 + c
    return idx


@functools.lru_cache(maxsize=None)
def _conv2_selection_np(batch):
    """(64B, 49B) 0/1 gather matrix implementing conv2's in-kernel im2col.

    Row = tap t * 16B + (pool-offset d * 4 + pool2 position p) * B + b;
    column = b*49 + pool1 spatial index.  Out-of-range taps (conv2 zero
    padding) leave all-zero rows.
    """
    sel = np.zeros((4 * 16 * batch, 49 * batch), np.float32)
    for ki in range(2):
        for kj in range(2):
            t = ki * 2 + kj
            for dh in range(2):
                for dw in range(2):
                    d = dh * 2 + dw
                    for ph in range(2):
                        for pw in range(2):
                            p = ph * 2 + pw
                            oh, ow = 2 * ph + dh, 2 * pw + dw        # conv2 out
                            h, w = 2 * oh + ki - 1, 2 * ow + kj - 1  # pool1 in
                            if 0 <= h < 7 and 0 <= w < 7:
                                for b in range(batch):
                                    sel[t * 16 * batch + (d * 4 + p) * batch + b,
                                        b * 49 + h * 7 + w] = 1.0
    return sel


@functools.lru_cache(maxsize=None)
def _conv2_selection(batch, dtype_name):
    # Hoisted + cached so the constant is built once per batch size.
    return jnp.asarray(_conv2_selection_np(batch), dtype=jnp.dtype(dtype_name))


# ---------------------------------------------------------------------------
# Parameters (deterministic synthetic init, PyTorch layouts) + one-time repack
# ---------------------------------------------------------------------------
def init_params(key):
    def uni(k, shape, fan_in):
        bound = 1.0 / (fan_in ** 0.5)
        return jax.random.uniform(k, shape, jnp.float32, -bound, bound)

    ks = jax.random.split(key, 10)
    return {
        "conv1_w": uni(ks[0], (64, 1, 3, 3), 9),
        "conv1_b": uni(ks[1], (64,), 9),
        "conv2_w": uni(ks[2], (48, 64, 2, 2), 256),
        "conv2_b": uni(ks[3], (48,), 256),
        "fc1_w": uni(ks[4], (128, 192), 192),     # PyTorch (out, in)
        "fc1_b": uni(ks[5], (128,), 192),
        "fc2_w": uni(ks[6], (LATENT_DIM, 128), 128),
        "fc2_b": uni(ks[7], (LATENT_DIM,), 128),
        "mlp_w": uni(ks[8], (1, LATENT_DIM), LATENT_DIM),
        "mlp_b": uni(ks[9], (1,), LATENT_DIM),
    }


def prepare_params(p):
    """One-time repack of PyTorch-layout weights into two kernel slabs.

    Everything the MXU touches goes into ONE MXU-dtype slab (static, tile
    aligned row offsets); biases + the pre-composed fc2@head live in ONE tiny
    f32 slab, so the kernel does exactly 2 weight DMAs.
    """
    f32 = jnp.float32

    # conv1: tap-major (9, 64) -> block-diagonal (36, 512): quadrant q uses
    # rows q*9..q*9+8 and lanes q*128..q*128+63; zeros elsewhere.
    w1 = jnp.transpose(p["conv1_w"][:, 0], (1, 2, 0)).reshape(9, 64)
    w1bd = jnp.zeros((36, 512), f32)
    for q in range(4):
        w1bd = w1bd.at[q * 9:(q + 1) * 9, q * 128:q * 128 + 64].set(w1)

    # conv2: per-tap (cin, cout) -> lane-block-diagonal (128, 512): tap t uses
    # lanes t*128..t*128+47; cin rows 64..127 are zero (pool1 lane padding).
    w2 = jnp.transpose(p["conv2_w"], (2, 3, 1, 0)).reshape(4, 64, 48)
    w2wide = jnp.zeros((128, 512), f32)
    for t in range(4):
        w2wide = w2wide.at[0:64, t * 128:t * 128 + 48].set(w2[t])

    # fc1: fold the NCHW flatten permutation; Wfc1alt[c, p*128 + o] =
    # fc1_w[o, c*4 + p]  (c = conv2 channel, p = 2x2 spatial position).
    wfc1_split = jnp.transpose(p["fc1_w"].reshape(128, 48, 4), (2, 1, 0))  # (4,48,128)
    wfc1alt = jnp.zeros((128, 512), f32)
    for sp in range(4):
        wfc1alt = wfc1alt.at[0:48, sp * 128:(sp + 1) * 128].set(wfc1_split[sp])

    # Single MXU slab; row offsets 0 / 48 / 176 are multiples of 16 (bf16 tile).
    wslab = jnp.concatenate(
        [w1bd, jnp.zeros((12, 512), f32), w2wide, wfc1alt], axis=0)  # (304, 512)

    # Pre-composed head: Linear(128,10) o Linear(10,1) (no nonlinearity between).
    w_head = (p["fc2_w"].T @ p["mlp_w"].T).reshape(1, 128)           # (1, 128)
    b_head = (p["fc2_b"].reshape(1, LATENT_DIM) @ p["mlp_w"].T
              + p["mlp_b"].reshape(1, 1))                            # (1, 1)

    def pad_row(v, n):
        return jnp.zeros((1, 128), f32).at[0, :n].set(v)

    fslab = jnp.concatenate([
        pad_row(p["conv1_b"], 64),
        pad_row(p["conv2_b"], 48),
        p["fc1_b"].reshape(1, 128),
        w_head,
        jnp.broadcast_to(b_head, (1, 128)),
    ], axis=0).astype(f32)                                           # (5, 128)

    return {"wslab": wslab.astype(MXU_DTYPE), "fslab": fslab}


# ---------------------------------------------------------------------------
# Forward
# ---------------------------------------------------------------------------
def mlp_ae_forward(packed, x_nchw):
    """x_nchw: (B, 1, 28, 28) float32 -> (B, 1), matching MLP_AE.forward."""
    batch = x_nchw.shape[0]
    mxu_dt = packed["wslab"].dtype
    # Input-side prep on the tiny raw image (~6 KB): pad + one static gather
    # laying out the conv1/pool1 taps.  Everything downstream stays in VMEM.
    xp = jnp.pad(x_nchw[:, 0], ((0, 0), (1, 1), (1, 1)))              # (B,30,30)
    idx = jnp.asarray(_conv1_tap_indices())                           # (49, 36)
    taps = (xp.reshape(batch, 900)[:, idx]
            .reshape(batch * 49, 36).astype(mxu_dt))                  # (B*49,36)
    sel = _conv2_selection(batch, jnp.dtype(mxu_dt).name)             # (64B,49B)

    out = pl.pallas_call(
        _mlp_ae_kernel,
        out_shape=jax.ShapeDtypeStruct((batch, 128), jnp.float32),
        in_specs=[_vmem()] * 4,
        out_specs=_vmem(),
    )(taps, sel, packed["wslab"], packed["fslab"])
    return out[:, :1]


if __name__ == "__main__":
    key = jax.random.PRNGKey(0)
    pkey, xkey = jax.random.split(key)
    params = init_params(pkey)
    packed = prepare_params(params)          # one-time weight repack (not jitted)
    # batch=2; 28x28 single-channel input is dictated by Flatten -> Linear(192,.)
    x = jax.random.normal(xkey, (2, 1, 28, 28), jnp.float32)
    out = jax.jit(mlp_ae_forward)(packed, x)
    out = jax.block_until_ready(out)
    assert out.shape == (2, 1)
    assert bool(jnp.all(jnp.isfinite(out)))
    print("KERNEL_OK")
</pallas_src>

<mosaic_0001>
module attributes {stable_mosaic.version = 11 : i64} {
  func.func @_mlp_ae_kernel(%arg0: memref<98x36xbf16, #tpu.memory_space<vmem>>, %arg1: memref<128x98xbf16, #tpu.memory_space<vmem>>, %arg2: memref<304x512xbf16, #tpu.memory_space<vmem>>, %arg3: memref<5x128xf32, #tpu.memory_space<vmem>>, %arg4: memref<2x128xf32, #tpu.memory_space<vmem>>) attributes {dimension_semantics = [], scalar_prefetch = 0 : i64, scratch_operands = 0 : i64, tpu.core_type = #tpu.core_type<tc>} {
    %c0 = arith.constant 0 : index
    %c0_0 = arith.constant 0 : index
    %0 = vector.load %arg3[%c0, %c0_0] : memref<5x128xf32, #tpu.memory_space<vmem>>, vector<5x128xf32>
    %1 = vector.extract_strided_slice %0 {offsets = [0, 0], sizes = [1, 128], strides = [1, 1]} : vector<5x128xf32> to vector<1x128xf32>
    %2 = vector.extract_strided_slice %0 {offsets = [1, 0], sizes = [1, 128], strides = [1, 1]} : vector<5x128xf32> to vector<1x128xf32>
    %3 = vector.extract_strided_slice %0 {offsets = [2, 0], sizes = [1, 128], strides = [1, 1]} : vector<5x128xf32> to vector<1x128xf32>
    %4 = vector.extract_strided_slice %0 {offsets = [3, 0], sizes = [1, 128], strides = [1, 1]} : vector<5x128xf32> to vector<1x128xf32>
    %5 = vector.extract_strided_slice %0 {offsets = [4, 0], sizes = [1, 1], strides = [1, 1]} : vector<5x128xf32> to vector<1x1xf32>
    %c0_1 = arith.constant 0 : index
    %c0_2 = arith.constant 0 : index
    %6 = vector.load %arg2[%c0_1, %c0_2] : memref<304x512xbf16, #tpu.memory_space<vmem>>, vector<36x512xbf16>
    %c0_3 = arith.constant 0 : index
    %c0_4 = arith.constant 0 : index
    %7 = vector.load %arg0[%c0_3, %c0_4] : memref<98x36xbf16, #tpu.memory_space<vmem>>, vector<98x36xbf16>
    %cst = arith.constant dense<0.000000e+00> : vector<98x512xf32>
    %8 = tpu.matmul %7, %6, %cst {dimension_numbers = #tpu.dot_dimension_numbers<[1], [0], [0], [1], [0, 0, 1, 1], [], []>} : vector<98x36xbf16>, vector<36x512xbf16>, vector<98x512xf32> -> vector<98x512xf32>
    %9 = vector.extract_strided_slice %8 {offsets = [0, 0], sizes = [98, 128], strides = [1, 1]} : vector<98x512xf32> to vector<98x128xf32>
    %10 = vector.extract_strided_slice %8 {offsets = [0, 128], sizes = [98, 128], strides = [1, 1]} : vector<98x512xf32> to vector<98x128xf32>
    %11 = arith.maximumf %9, %10 : vector<98x128xf32>
    %12 = vector.extract_strided_slice %8 {offsets = [0, 256], sizes = [98, 128], strides = [1, 1]} : vector<98x512xf32> to vector<98x128xf32>
    %13 = vector.extract_strided_slice %8 {offsets = [0, 384], sizes = [98, 128], strides = [1, 1]} : vector<98x512xf32> to vector<98x128xf32>
    %14 = arith.maximumf %12, %13 : vector<98x128xf32>
    %15 = arith.maximumf %11, %14 : vector<98x128xf32>
    %16 = vector.broadcast %1 : vector<1x128xf32> to vector<98x128xf32>
    %17 = arith.addf %15, %16 : vector<98x128xf32>
    %cst_5 = arith.constant 0.000000e+00 : f32
    %18 = vector.broadcast %cst_5 : f32 to vector<98x128xf32>
    %19 = arith.maximumf %17, %18 : vector<98x128xf32>
    %20 = arith.truncf %19 : vector<98x128xf32> to vector<98x128xbf16>
    %c0_6 = arith.constant 0 : index
    %c0_7 = arith.constant 0 : index
    %21 = vector.load %arg1[%c0_6, %c0_7] : memref<128x98xbf16, #tpu.memory_space<vmem>>, vector<128x98xbf16>
    %cst_8 = arith.constant dense<0.000000e+00> : vector<128x128xf32>
    %22 = tpu.matmul %21, %20, %cst_8 {dimension_numbers = #tpu.dot_dimension_numbers<[1], [0], [0], [1], [0, 0, 1, 1], [], []>} : vector<128x98xbf16>, vector<98x128xbf16>, vector<128x128xf32> -> vector<128x128xf32>
    %c48 = arith.constant 48 : index
    %c0_9 = arith.constant 0 : index
    %23 = vector.load %arg2[%c48, %c0_9] : memref<304x512xbf16, #tpu.memory_space<vmem>>, vector<128x512xbf16>
    %24 = arith.truncf %22 : vector<128x128xf32> to vector<128x128xbf16>
    %cst_10 = arith.constant dense<0.000000e+00> : vector<128x512xf32>
    %25 = tpu.matmul %24, %23, %cst_10 {dimension_numbers = #tpu.dot_dimension_numbers<[1], [0], [0], [1], [0, 0, 1, 1], [], []>} : vector<128x128xbf16>, vector<128x512xbf16>, vector<128x512xf32> -> vector<128x512xf32>
    %26 = vector.extract_strided_slice %25 {offsets = [0, 0], sizes = [32, 128], strides = [1, 1]} : vector<128x512xf32> to vector<32x128xf32>
    %27 = vector.extract_strided_slice %25 {offsets = [32, 128], sizes = [32, 128], strides = [1, 1]} : vector<128x512xf32> to vector<32x128xf32>
    %28 = arith.addf %26, %27 : vector<32x128xf32>
    %29 = vector.extract_strided_slice %25 {offsets = [64, 256], sizes = [32, 128], strides = [1, 1]} : vector<128x512xf32> to vector<32x128xf32>
    %30 = arith.addf %28, %29 : vector<32x128xf32>
    %31 = vector.extract_strided_slice %25 {offsets = [96, 384], sizes = [32, 128], strides = [1, 1]} : vector<128x512xf32> to vector<32x128xf32>
    %32 = arith.addf %30, %31 : vector<32x128xf32>
    %33 = vector.broadcast %2 : vector<1x128xf32> to vector<32x128xf32>
    %34 = arith.addf %32, %33 : vector<32x128xf32>
    %cst_11 = arith.constant 0.000000e+00 : f32
    %35 = vector.broadcast %cst_11 : f32 to vector<32x128xf32>
    %36 = arith.maximumf %34, %35 : vector<32x128xf32>
    %37 = vector.extract_strided_slice %36 {offsets = [0, 0], sizes = [8, 128], strides = [1, 1]} : vector<32x128xf32> to vector<8x128xf32>
    %38 = vector.extract_strided_slice %36 {offsets = [8, 0], sizes = [8, 128], strides = [1, 1]} : vector<32x128xf32> to vector<8x128xf32>
    %39 = arith.maximumf %37, %38 : vector<8x128xf32>
    %40 = vector.extract_strided_slice %36 {offsets = [16, 0], sizes = [8, 128], strides = [1, 1]} : vector<32x128xf32> to vector<8x128xf32>
    %41 = vector.extract_strided_slice %36 {offsets = [24, 0], sizes = [8, 128], strides = [1, 1]} : vector<32x128xf32> to vector<8x128xf32>
    %42 = arith.maximumf %40, %41 : vector<8x128xf32>
    %43 = arith.maximumf %39, %42 : vector<8x128xf32>
    %c176 = arith.constant 176 : index
    %c0_12 = arith.constant 0 : index
    %44 = vector.load %arg2[%c176, %c0_12] : memref<304x512xbf16, #tpu.memory_space<vmem>>, vector<128x512xbf16>
    %45 = arith.truncf %43 : vector<8x128xf32> to vector<8x128xbf16>
    %cst_13 = arith.constant dense<0.000000e+00> : vector<8x512xf32>
    %46 = tpu.matmul %45, %44, %cst_13 {dimension_numbers = #tpu.dot_dimension_numbers<[1], [0], [0], [1], [0, 0, 1, 1], [], []>} : vector<8x128xbf16>, vector<128x512xbf16>, vector<8x512xf32> -> vector<8x512xf32>
    %47 = vector.extract_strided_slice %46 {offsets = [0, 0], sizes = [2, 128], strides = [1, 1]} : vector<8x512xf32> to vector<2x128xf32>
    %48 = vector.extract_strided_slice %46 {offsets = [2, 128], sizes = [2, 128], strides = [1, 1]} : vector<8x512xf32> to vector<2x128xf32>
    %49 = arith.addf %47, %48 : vector<2x128xf32>
    %50 = vector.extract_strided_slice %46 {offsets = [4, 256], sizes = [2, 128], strides = [1, 1]} : vector<8x512xf32> to vector<2x128xf32>
    %51 = arith.addf %49, %50 : vector<2x128xf32>
    %52 = vector.extract_strided_slice %46 {offsets = [6, 384], sizes = [2, 128], strides = [1, 1]} : vector<8x512xf32> to vector<2x128xf32>
    %53 = arith.addf %51, %52 : vector<2x128xf32>
    %54 = vector.broadcast %3 : vector<1x128xf32> to vector<2x128xf32>
    %55 = arith.addf %53, %54 : vector<2x128xf32>
    %cst_14 = arith.constant 0.000000e+00 : f32
    %56 = vector.broadcast %cst_14 : f32 to vector<2x128xf32>
    %57 = arith.maximumf %55, %56 : vector<2x128xf32>
    %58 = vector.broadcast %4 : vector<1x128xf32> to vector<2x128xf32>
    %59 = arith.mulf %57, %58 : vector<2x128xf32>
    %cst_15 = arith.constant dense<0.000000e+00> : vector<2xf32>
    %60 = vector.multi_reduction <add>, %59, %cst_15 [1] : vector<2x128xf32> to vector<2xf32>
    %61 = vector.shape_cast %60 : vector<2xf32> to vector<2x1xf32>
    %62 = vector.broadcast %5 : vector<1x1xf32> to vector<2x1xf32>
    %63 = arith.addf %61, %62 : vector<2x1xf32>
    %cst_16 = arith.constant dense<0xFF800000> : vector<2xf32>
    %64 = vector.multi_reduction <maximumf>, %63, %cst_16 [1] : vector<2x1xf32> to vector<2xf32>
    %65 = vector.shape_cast %64 : vector<2xf32> to vector<2x1xf32>
    %66 = arith.subf %63, %65 : vector<2x1xf32>
    %67 = math.exp %66 : vector<2x1xf32>
    %cst_17 = arith.constant dense<0.000000e+00> : vector<2xf32>
    %68 = vector.multi_reduction <add>, %67, %cst_17 [1] : vector<2x1xf32> to vector<2xf32>
    %69 = vector.shape_cast %68 : vector<2xf32> to vector<2x1xf32>
    %70 = arith.divf %67, %69 : vector<2x1xf32>
    %71 = vector.shape_cast %70 : vector<2x1xf32> to vector<2x1xf32>
    %72 = vector.broadcast %71 : vector<2x1xf32> to vector<2x128xf32>
    %c0_18 = arith.constant 0 : index
    %c0_19 = arith.constant 0 : index
    %73 = vector.load %arg4[%c0_18, %c0_19] : memref<2x128xf32, #tpu.memory_space<vmem>>, vector<2x128xf32>
    tpu.vector_store %arg4[%c0_18, %c0_19], %72 {strides = array<i32>} : memref<2x128xf32, #tpu.memory_space<vmem>>, vector<2x128xf32>,
    return
  }
}

</mosaic_0001>

<llo_original>
// kernel: mlp_ae_forward.1
$region0: #{mlp_ae_forward.1}
  #allocation0 [shape = 'u32[]', space=smem, size = 0x4, offset = 0x4, fixed_abs, tag = 'smem constant byte address 0x4 - core index']
  #allocation1 [shape = 'u32[72,128]{1,0:T(1,128)}', space=vmem, size = 0x9000, scoped, tag = 'internal scratch']
  %s0 = inlined_call_operand.vmem [shape: bf16[98,36], index: 0, kind: input, shape index: {}]
  %s1 = inlined_call_operand.vmem [shape: bf16[128,98], index: 1, kind: input, shape index: {}]
  %s2 = inlined_call_operand.vmem [shape: bf16[304,512], index: 2, kind: input, shape index: {}]
  %s3 = inlined_call_operand.vmem [shape: f32[5,128], index: 3, kind: input, shape index: {}]
  %s4 = inlined_call_operand.vmem [shape: f32[2,128], index: 4, kind: output, shape index: {}]
  %s5 = sld [smem:[#allocation0]]
  $region26: #{mlp_ae_forward.1} parent=0
    _
  %s7 = ssub.s32 1, %s5
  %s8 = scalar_select 0, %s7, %s5
  // Predicated region
  $region2: #{mlp_ae_forward.1} parent=0 // pred_check
    _
  $region3: #{mlp_ae_forward.1} parent=0 // pred_check_branch
    %10 = sbr.rel (0) target = $region5
  $region4: #{mlp_ae_forward.1} parent=0 // pred_region
    _
  $region5: #{mlp_ae_forward.1} parent=0 // pred_fallthru
    _
  // Predicated region
  $region6: #{mlp_ae_forward.1} parent=0 // pred_check
    _
  $region7: #{mlp_ae_forward.1} parent=0 // pred_check_branch
    %12 = sbr.rel (0) target = $region9
  $region8: #{mlp_ae_forward.1} parent=0 // pred_region
    _
  $region9: #{mlp_ae_forward.1} parent=0 // pred_fallthru
    _
  // Predicated region
  $region10: #{mlp_ae_forward.1} parent=0 // pred_check
    _
  $region11: #{mlp_ae_forward.1} parent=0 // pred_check_branch
    %14 = sbr.rel (0) target = $region13
  $region12: #{mlp_ae_forward.1} parent=0 // pred_region
    _
  $region13: #{mlp_ae_forward.1} parent=0 // pred_fallthru
    _
  // Predicated region
  $region14: #{mlp_ae_forward.1} parent=0 // pred_check
    _
  $region15: #{mlp_ae_forward.1} parent=0 // pred_check_branch
    %16 = sbr.rel (0) target = $region17
  $region16: #{mlp_ae_forward.1} parent=0 // pred_region
    _
  $region17: #{mlp_ae_forward.1} parent=0 // pred_fallthru
    _
  %v18 = vld [vmem:[%s3] sm:$0x1f]
  %v19 = vld [vmem:[%s2] sm:$0xff]
  %v20 = vld [vmem:[%s2 + $0x8] sm:$0xff]
  %v21 = vld [vmem:[%s2 + $0x10] sm:$0xff]
  %v22 = vld [vmem:[%s2 + $0x18] sm:$0xff]
  %v23 = vld [vmem:[%s2 + $0x20] sm:$0xff]
  %v24 = vld [vmem:[%s2 + $0x28] sm:$0xff]
  %v25 = vld [vmem:[%s2 + $0x30] sm:$0xff]
  %v26 = vld [vmem:[%s2 + $0x38] sm:$0xff]
  %v27 = vld [vmem:[%s2 + $0x40] sm:$0x33]
  %v28 = vld [vmem:[%s2 + $0x48] sm:$0x33]
  %v29 = vld [vmem:[%s0] sm:$0xf]
  %v30 = vld [vmem:[%s0 + $0x4] sm:$0xf]
  %v31 = vld [vmem:[%s0 + $0x8] sm:$0xf]
  %v32 = vld [vmem:[%s0 + $0xc] sm:$0xf]
  %v33 = vld [vmem:[%s0 + $0x10] sm:$0xf]
  %v34 = vld [vmem:[%s0 + $0x14] sm:$0xf]
  %v35 = vld [vmem:[%s0 + $0x18] sm:$0xf]
  %v36 = vld [vmem:[%s0 + $0x1c] sm:$0xf]
  %v37 = vld [vmem:[%s0 + $0x20] sm:$0xf]
  %v38 = vld [vmem:[%s0 + $0x24] sm:$0xf]
  %v39 = vld [vmem:[%s0 + $0x28] sm:$0xf]
  %v40 = vld [vmem:[%s0 + $0x2c] sm:$0xf]
  %v41 = vld [vmem:[%s0 + $0x30] sm:$0x1]
  %v55 = vunpack.c.l.b16 %v29
  %v56 = vunpack.c.l.b16 %v30
  %v57 = vunpack.c.l.b16 %v31
  %v58 = vunpack.c.l.b16 %v32
  %v59 = vunpack.c.l.b16 %v33
  %v60 = vunpack.c.l.b16 %v34
  %v61 = vunpack.c.l.b16 %v35
  %v62 = vunpack.c.l.b16 %v36
  %v63 = vunpack.c.l.b16 %v37
  %v64 = vunpack.c.l.b16 %v38
  %v65 = vunpack.c.l.b16 %v39
  %v66 = vunpack.c.l.b16 %v40
  %v67 = vunpack.c.l.b16 %v41
  %v68 = vpack.c.b16 %v56, %v55
  %v69 = vpack.c.b16 %v58, %v57
  %v70 = vpack.c.b16 %v60, %v59
  %v71 = vpack.c.b16 %v62, %v61
  %v72 = vpack.c.b16 %v64, %v63
  %v73 = vpack.c.b16 %v66, %v65
  %v74 = vpack.c.b16 %v67, %v67
  %v85 = vunpack.c.l.b16 %v19
  %v86 = vunpack.c.h.b16 %v19
  %v87 = vunpack.c.l.b16 %v20
  %v88 = vunpack.c.h.b16 %v20
  %v89 = vunpack.c.l.b16 %v21
  %v90 = vunpack.c.h.b16 %v21
  %v91 = vunpack.c.l.b16 %v22
  %v92 = vunpack.c.h.b16 %v22
  %v93 = vunpack.c.l.b16 %v23
  %v94 = vunpack.c.h.b16 %v23
  %v95 = vunpack.c.l.b16 %v24
  %v96 = vunpack.c.h.b16 %v24
  %v97 = vunpack.c.l.b16 %v25
  %v98 = vunpack.c.h.b16 %v25
  %v99 = vunpack.c.l.b16 %v26
  %v100 = vunpack.c.h.b16 %v26
  %v101 = vunpack.c.l.b16 %v27
  %v102 = vunpack.c.h.b16 %v27
  %v103 = vunpack.c.l.b16 %v28
  %v104 = vunpack.c.h.b16 %v28
  %v105 = vpack.c.b16 %v89, %v85
  %v106 = vpack.c.b16 %v90, %v86
  %v107 = vpack.c.b16 %v91, %v87
  %v108 = vpack.c.b16 %v92, %v88
  %v109 = vpack.c.b16 %v97, %v93
  %v110 = vpack.c.b16 %v98, %v94
  %v111 = vpack.c.b16 %v99, %v95
  %v112 = vpack.c.b16 %v100, %v96
  %v113 = vpack.c.b16 %v101, %v101
  %v114 = vpack.c.b16 %v102, %v102
  %v115 = vpack.c.b16 %v103, %v103
  %v116 = vpack.c.b16 %v104, %v104
  %vm125 = vcmask 293888
  %v127 = vsel %vm125, %v68, 0
  %v130 = vsel %vm125, %v69, 0
  %v133 = vsel %vm125, %v70, 0
  %v136 = vsel %vm125, %v71, 0
  %v139 = vsel %vm125, %v72, 0
  %v142 = vsel %vm125, %v73, 0
  %v145 = vsel %vm125, %v74, 0
  %vm147 = vcmask 1041408
  %v149 = vsel %vm147, %v113, 0
  %v152 = vsel %vm147, %v114, 0
  %v155 = vsel %vm147, %v115, 0
  %v158 = vsel %vm147, %v116, 0
  %160 = vmatpush.bf16.msra.mxu0 0
  %161 = vmatpush.bf16.msra.mxu0 0
  %162 = vmatpush.bf16.msra.mxu0 0
  %163 = vmatpush.bf16.msra.mxu0 0
  %164 = vmatpush.bf16.msra.mxu0 0
  %165 = vmatpush.bf16.msra.mxu0 %v149
  %166 = vmatpush.bf16.msra.mxu0 %v109
  %167 = vmatpush.bf16.msra.mxu0 %v105
  %168 = vmatmul.bf16.gmra.mxu0 %v127
  %v169 = vpop.f32.mrf.mxu0
  %v170 = vadd.f32 0.0, %v169
  %v171 = vpop.f32.mrf.mxu0
  %v172 = vadd.f32 0.0, %v171
  %173 = vmatmul.bf16.gmra.mxu0 %v130
  %v174 = vpop.f32.mrf.mxu0
  %v175 = vadd.f32 0.0, %v174
  %v176 = vpop.f32.mrf.mxu0
  %v177 = vadd.f32 0.0, %v176
  %178 = vmatmul.bf16.gmra.mxu0 %v133
  %v179 = vpop.f32.mrf.mxu0
  %v180 = vadd.f32 0.0, %v179
  %v181 = vpop.f32.mrf.mxu0
  %v182 = vadd.f32 0.0, %v181
  %183 = vmatmul.bf16.gmra.mxu0 %v136
  %v184 = vpop.f32.mrf.mxu0
  %v185 = vadd.f32 0.0, %v184
  %v186 = vpop.f32.mrf.mxu0
  %v187 = vadd.f32 0.0, %v186
  %188 = vmatmul.bf16.gmra.mxu0 %v139
  %v189 = vpop.f32.mrf.mxu0
  %v190 = vadd.f32 0.0, %v189
  %v191 = vpop.f32.mrf.mxu0
  %v192 = vadd.f32 0.0, %v191
  %193 = vmatmul.bf16.gmra.mxu0 %v142
  %v194 = vpop.f32.mrf.mxu0
  %v195 = vadd.f32 0.0, %v194
  %v196 = vpop.f32.mrf.mxu0
  %v197 = vadd.f32 0.0, %v196
  %198 = vmatmul.bf16.gmra.mxu0 %v145
  %v199 = vpop.f32.mrf.mxu0
  %v200 = vadd.f32 0.0, %v199
  %v201 = vpop.f32.mrf.mxu0
  %202 = vdwg.mxu0
  %203 = vmatpush.bf16.msra.mxu0 0
  %204 = vmatpush.bf16.msra.mxu0 0
  %205 = vmatpush.bf16.msra.mxu0 0
  %206 = vmatpush.bf16.msra.mxu0 0
  %207 = vmatpush.bf16.msra.mxu0 0
  %208 = vmatpush.bf16.msra.mxu0 %v152
  %209 = vmatpush.bf16.msra.mxu0 %v110
  %210 = vmatpush.bf16.msra.mxu0 %v106
  %211 = vmatmul.bf16.gmra.mxu0 %v127
  %v212 = vpop.f32.mrf.mxu0
  %v213 = vadd.f32 0.0, %v212
  %v214 = vpop.f32.mrf.mxu0
  %v215 = vadd.f32 0.0, %v214
  %216 = vmatmul.bf16.gmra.mxu0 %v130
  %v217 = vpop.f32.mrf.mxu0
  %v218 = vadd.f32 0.0, %v217
  %v219 = vpop.f32.mrf.mxu0
  %v220 = vadd.f32 0.0, %v219
  %221 = vmatmul.bf16.gmra.mxu0 %v133
  %v222 = vpop.f32.mrf.mxu0
  %v223 = vadd.f32 0.0, %v222
  %v224 = vpop.f32.mrf.mxu0
  %v225 = vadd.f32 0.0, %v224
  %226 = vmatmul.bf16.gmra.mxu0 %v136
  %v227 = vpop.f32.mrf.mxu0
  %v228 = vadd.f32 0.0, %v227
  %v229 = vpop.f32.mrf.mxu0
  %v230 = vadd.f32 0.0, %v229
  %231 = vmatmul.bf16.gmra.mxu0 %v139
  %v232 = vpop.f32.mrf.mxu0
  %v233 = vadd.f32 0.0, %v232
  %v234 = vpop.f32.mrf.mxu0
  %v235 = vadd.f32 0.0, %v234
  %236 = vmatmul.bf16.gmra.mxu0 %v142
  %v237 = vpop.f32.mrf.mxu0
  %v238 = vadd.f32 0.0, %v237
  %v239 = vpop.f32.mrf.mxu0
  %v240 = vadd.f32 0.0, %v239
  %241 = vmatmul.bf16.gmra.mxu0 %v145
  %v242 = vpop.f32.mrf.mxu0
  %v243 = vadd.f32 0.0, %v242
  %v244 = vpop.f32.mrf.mxu0
  %245 = vdwg.mxu0
  %246 = vmatpush.bf16.msra.mxu0 0
  %247 = vmatpush.bf16.msra.mxu0 0
  %248 = vmatpush.bf16.msra.mxu0 0
  %249 = vmatpush.bf16.msra.mxu0 0
  %250 = vmatpush.bf16.msra.mxu0 0
  %251 = vmatpush.bf16.msra.mxu0 %v155
  %252 = vmatpush.bf16.msra.mxu0 %v111
  %253 = vmatpush.bf16.msra.mxu0 %v107
  %254 = vmatmul.bf16.gmra.mxu0 %v127
  %v255 = vpop.f32.mrf.mxu0
  %v256 = vadd.f32 0.0, %v255
  %v257 = vpop.f32.mrf.mxu0
  %v258 = vadd.f32 0.0, %v257
  %259 = vmatmul.bf16.gmra.mxu0 %v130
  %v260 = vpop.f32.mrf.mxu0
  %v261 = vadd.f32 0.0, %v260
  %v262 = vpop.f32.mrf.mxu0
  %v263 = vadd.f32 0.0, %v262
  %264 = vmatmul.bf16.gmra.mxu0 %v133
  %v265 = vpop.f32.mrf.mxu0
  %v266 = vadd.f32 0.0, %v265
  %v267 = vpop.f32.mrf.mxu0
  %v268 = vadd.f32 0.0, %v267
  %269 = vmatmul.bf16.gmra.mxu0 %v136
  %v270 = vpop.f32.mrf.mxu0
  %v271 = vadd.f32 0.0, %v270
  %v272 = vpop.f32.mrf.mxu0
  %v273 = vadd.f32 0.0, %v272
  %274 = vmatmul.bf16.gmra.mxu0 %v139
  %v275 = vpop.f32.mrf.mxu0
  %v276 = vadd.f32 0.0, %v275
  %v277 = vpop.f32.mrf.mxu0
  %v278 = vadd.f32 0.0, %v277
  %279 = vmatmul.bf16.gmra.mxu0 %v142
  %v280 = vpop.f32.mrf.mxu0
  %v281 = vadd.f32 0.0, %v280
  %v282 = vpop.f32.mrf.mxu0
  %v283 = vadd.f32 0.0, %v282
  %284 = vmatmul.bf16.gmra.mxu0 %v145
  %v285 = vpop.f32.mrf.mxu0
  %v286 = vadd.f32 0.0, %v285
  %v287 = vpop.f32.mrf.mxu0
  %288 = vdwg.mxu0
  %289 = vmatpush.bf16.msra.mxu0 0
  %290 = vmatpush.bf16.msra.mxu0 0
  %291 = vmatpush.bf16.msra.mxu0 0
  %292 = vmatpush.bf16.msra.mxu0 0
  %293 = vmatpush.bf16.msra.mxu0 0
  %294 = vmatpush.bf16.msra.mxu0 %v158
  %295 = vmatpush.bf16.msra.mxu0 %v112
  %296 = vmatpush.bf16.msra.mxu0 %v108
  %297 = vmatmul.bf16.gmra.mxu0 %v127
  %v298 = vpop.f32.mrf.mxu0
  %v299 = vadd.f32 0.0, %v298
  %v300 = vpop.f32.mrf.mxu0
  %v301 = vadd.f32 0.0, %v300
  %302 = vmatmul.bf16.gmra.mxu0 %v130
  %v303 = vpop.f32.mrf.mxu0
  %v304 = vadd.f32 0.0, %v303
  %v305 = vpop.f32.mrf.mxu0
  %v306 = vadd.f32 0.0, %v305
  %307 = vmatmul.bf16.gmra.mxu0 %v133
  %v308 = vpop.f32.mrf.mxu0
  %v309 = vadd.f32 0.0, %v308
  %v310 = vpop.f32.mrf.mxu0
  %v311 = vadd.f32 0.0, %v310
  %312 = vmatmul.bf16.gmra.mxu0 %v136
  %v313 = vpop.f32.mrf.mxu0
  %v314 = vadd.f32 0.0, %v313
  %v315 = vpop.f32.mrf.mxu0
  %v316 = vadd.f32 0.0, %v315
  %317 = vmatmul.bf16.gmra.mxu0 %v139
  %v318 = vpop.f32.mrf.mxu0
  %v319 = vadd.f32 0.0, %v318
  %v320 = vpop.f32.mrf.mxu0
  %v321 = vadd.f32 0.0, %v320
  %322 = vmatmul.bf16.gmra.mxu0 %v142
  %v323 = vpop.f32.mrf.mxu0
  %v324 = vadd.f32 0.0, %v323
  %v325 = vpop.f32.mrf.mxu0
  %v326 = vadd.f32 0.0, %v325
  %327 = vmatmul.bf16.gmra.mxu0 %v145
  %v328 = vpop.f32.mrf.mxu0
  %v329 = vadd.f32 0.0, %v328
  %v330 = vpop.f32.mrf.mxu0
  %331 = vdwg.mxu0
  %v332 = vmax.f32 %v170, %v213
  %v333 = vmax.f32 %v172, %v215
  %v334 = vmax.f32 %v175, %v218
  %v335 = vmax.f32 %v177, %v220
  %v336 = vmax.f32 %v180, %v223
  %v337 = vmax.f32 %v182, %v225
  %v338 = vmax.f32 %v185, %v228
  %v339 = vmax.f32 %v187, %v230
  %v340 = vmax.f32 %v190, %v233
  %v341 = vmax.f32 %v192, %v235
  %v342 = vmax.f32 %v195, %v238
  %v343 = vmax.f32 %v197, %v240
  %v344 = vmax.f32 %v200, %v243
  %v345 = vmax.f32 %v256, %v299
  %v346 = vmax.f32 %v258, %v301
  %v347 = vmax.f32 %v261, %v304
  %v348 = vmax.f32 %v263, %v306
  %v349 = vmax.f32 %v266, %v309
  %v350 = vmax.f32 %v268, %v311
  %v351 = vmax.f32 %v271, %v314
  %v352 = vmax.f32 %v273, %v316
  %v353 = vmax.f32 %v276, %v319
  %v354 = vmax.f32 %v278, %v321
  %v355 = vmax.f32 %v281, %v324
  %v356 = vmax.f32 %v283, %v326
  %v357 = vmax.f32 %v286, %v329
  %v358 = vmax.f32 %v332, %v345
  %v359 = vmax.f32 %v333, %v346
  %v360 = vmax.f32 %v334, %v347
  %v361 = vmax.f32 %v335, %v348
  %v362 = vmax.f32 %v336, %v349
  %v363 = vmax.f32 %v337, %v350
  %v364 = vmax.f32 %v338, %v351
  %v365 = vmax.f32 %v339, %v352
  %v366 = vmax.f32 %v340, %v353
  %v367 = vmax.f32 %v341, %v354
  %v368 = vmax.f32 %v342, %v355
  %v369 = vmax.f32 %v343, %v356
  %v370 = vmax.f32 %v344, %v357
  %v371 = vperm.slane %v18, 0
  %v372 = vadd.f32 %v358, %v371
  %v373 = vadd.f32 %v359, %v371
  %v374 = vadd.f32 %v360, %v371
  %v375 = vadd.f32 %v361, %v371
  %v376 = vadd.f32 %v362, %v371
  %v377 = vadd.f32 %v363, %v371
  %v378 = vadd.f32 %v364, %v371
  %v379 = vadd.f32 %v365, %v371
  %v380 = vadd.f32 %v366, %v371
  %v381 = vadd.f32 %v367, %v371
  %v382 = vadd.f32 %v368, %v371
  %v383 = vadd.f32 %v369, %v371
  %v384 = vadd.f32 %v370, %v371
  %v385 = vmax.f32 %v372, 0.0
  %v386 = vmax.f32 %v373, 0.0
  %v387 = vmax.f32 %v374, 0.0
  %v388 = vmax.f32 %v375, 0.0
  %v389 = vmax.f32 %v376, 0.0
  %v390 = vmax.f32 %v377, 0.0
  %v391 = vmax.f32 %v378, 0.0
  %v392 = vmax.f32 %v379, 0.0
  %v393 = vmax.f32 %v380, 0.0
  %v394 = vmax.f32 %v381, 0.0
  %v395 = vmax.f32 %v382, 0.0
  %v396 = vmax.f32 %v383, 0.0
  %v397 = vmax.f32 %v384, 0.0
  %v398 = vpack.c.bf16 %v386, %v385
  %v399 = vpack.c.bf16 %v388, %v387
  %v400 = vpack.c.bf16 %v390, %v389
  %v401 = vpack.c.bf16 %v392, %v391
  %v402 = vpack.c.bf16 %v394, %v393
  %v403 = vpack.c.bf16 %v396, %v395
  %v404 = vpack.c.bf16 %v397, %v397
  %v405 = vld [vmem:[%s1] sm:$0xf]
  %v406 = vld [vmem:[%s1 + $0x4] sm:$0xf]
  %v407 = vld [vmem:[%s1 + $0x8] sm:$0xf]
  %v408 = vld [vmem:[%s1 + $0xc] sm:$0xf]
  %v409 = vld [vmem:[%s1 + $0x10] sm:$0xf]
  %v410 = vld [vmem:[%s1 + $0x14] sm:$0xf]
  %v411 = vld [vmem:[%s1 + $0x18] sm:$0xf]
  %v412 = vld [vmem:[%s1 + $0x1c] sm:$0xf]
  %v413 = vld [vmem:[%s1 + $0x20] sm:$0xf]
  %v414 = vld [vmem:[%s1 + $0x24] sm:$0xf]
  %v415 = vld [vmem:[%s1 + $0x28] sm:$0xf]
  %v416 = vld [vmem:[%s1 + $0x2c] sm:$0xf]
  %v417 = vld [vmem:[%s1 + $0x30] sm:$0xf]
  %v418 = vld [vmem:[%s1 + $0x34] sm:$0xf]
  %v419 = vld [vmem:[%s1 + $0x38] sm:$0xf]
  %v420 = vld [vmem:[%s1 + $0x3c] sm:$0xf]
  %v437 = vunpack.c.l.b16 %v405
  %v438 = vunpack.c.l.b16 %v406
  %v439 = vunpack.c.l.b16 %v407
  %v440 = vunpack.c.l.b16 %v408
  %v441 = vunpack.c.l.b16 %v409
  %v442 = vunpack.c.l.b16 %v410
  %v443 = vunpack.c.l.b16 %v411
  %v444 = vunpack.c.l.b16 %v412
  %v445 = vunpack.c.l.b16 %v413
  %v446 = vunpack.c.l.b16 %v414
  %v447 = vunpack.c.l.b16 %v415
  %v448 = vunpack.c.l.b16 %v416
  %v449 = vunpack.c.l.b16 %v417
  %v450 = vunpack.c.l.b16 %v418
  %v451 = vunpack.c.l.b16 %v419
  %v452 = vunpack.c.l.b16 %v420
  %v453 = vpack.c.b16 %v438, %v437
  %v454 = vpack.c.b16 %v440, %v439
  %v455 = vpack.c.b16 %v442, %v441
  %v456 = vpack.c.b16 %v444, %v443
  %v457 = vpack.c.b16 %v446, %v445
  %v458 = vpack.c.b16 %v448, %v447
  %v459 = vpack.c.b16 %v450, %v449
  %v460 = vpack.c.b16 %v452, %v451
  %vm461 = vcmask 801792
  %v463 = vsel %vm461, %v453, 0
  %v466 = vsel %vm461, %v454, 0
  %v469 = vsel %vm461, %v455, 0
  %v472 = vsel %vm461, %v456, 0
  %v475 = vsel %vm461, %v457, 0
  %v478 = vsel %vm461, %v458, 0
  %v481 = vsel %vm461, %v459, 0
  %v484 = vsel %vm461, %v460, 0
  %vm486 = vcmask 1040384
  %v488 = vsel %vm486, %v404, 0
  %490 = vmatpush.bf16.msra.mxu0 0
  %491 = vmatpush.bf16.msra.mxu0 %v488
  %492 = vmatpush.bf16.msra.mxu0 %v403
  %493 = vmatpush.bf16.msra.mxu0 %v402
  %494 = vmatpush.bf16.msra.mxu0 %v401
  %495 = vmatpush.bf16.msra.mxu0 %v400
  %496 = vmatpush.bf16.msra.mxu0 %v399
  %497 = vmatpush.bf16.msra.mxu0 %v398
  %498 = vmatmul.bf16.gmra.mxu0 %v463
  %v499 = vpop.f32.mrf.mxu0
  %v500 = vadd.f32 0.0, %v499
  %v501 = vpop.f32.mrf.mxu0
  %v502 = vadd.f32 0.0, %v501
  %503 = vmatmul.bf16.gmra.mxu0 %v466
  %v504 = vpop.f32.mrf.mxu0
  %v505 = vadd.f32 0.0, %v504
  %v506 = vpop.f32.mrf.mxu0
  %v507 = vadd.f32 0.0, %v506
  %508 = vmatmul.bf16.gmra.mxu0 %v469
  %v509 = vpop.f32.mrf.mxu0
  %v510 = vadd.f32 0.0, %v509
  %v511 = vpop.f32.mrf.mxu0
  %v512 = vadd.f32 0.0, %v511
  %513 = vmatmul.bf16.gmra.mxu0 %v472
  %v514 = vpop.f32.mrf.mxu0
  %v515 = vadd.f32 0.0, %v514
  %v516 = vpop.f32.mrf.mxu0
  %v517 = vadd.f32 0.0, %v516
  %518 = vmatmul.bf16.gmra.mxu0 %v475
  %v519 = vpop.f32.mrf.mxu0
  %v520 = vadd.f32 0.0, %v519
  %v521 = vpop.f32.mrf.mxu0
  %v522 = vadd.f32 0.0, %v521
  %523 = vmatmul.bf16.gmra.mxu0 %v478
  %v524 = vpop.f32.mrf.mxu0
  %v525 = vadd.f32 0.0, %v524
  %v526 = vpop.f32.mrf.mxu0
  %v527 = vadd.f32 0.0, %v526
  %528 = vmatmul.bf16.gmra.mxu0 %v481
  %v529 = vpop.f32.mrf.mxu0
  %v530 = vadd.f32 0.0, %v529
  %v531 = vpop.f32.mrf.mxu0
  %v532 = vadd.f32 0.0, %v531
  %533 = vmatmul.bf16.gmra.mxu0 %v484
  %v534 = vpop.f32.mrf.mxu0
  %v535 = vadd.f32 0.0, %v534
  %v536 = vpop.f32.mrf.mxu0
  %v537 = vadd.f32 0.0, %v536
  %538 = vdwg.mxu0
  %v539 = vld [vmem:[%s2 + $0x60] sm:$0xff]
  %v540 = vld [vmem:[%s2 + $0x68] sm:$0xff]
  %v541 = vld [vmem:[%s2 + $0x70] sm:$0xff]
  %v542 = vld [vmem:[%s2 + $0x78] sm:$0xff]
  %v543 = vld [vmem:[%s2 + $0x80] sm:$0xff]
  %v544 = vld [vmem:[%s2 + $0x88] sm:$0xff]
  %v545 = vld [vmem:[%s2 + $0x90] sm:$0xff]
  %v546 = vld [vmem:[%s2 + $0x98] sm:$0xff]
  %v547 = vld [vmem:[%s2 + $0xa0] sm:$0xff]
  %v548 = vld [vmem:[%s2 + $0xa8] sm:$0xff]
  %v549 = vld [vmem:[%s2 + $0xb0] sm:$0xff]
  %v550 = vld [vmem:[%s2 + $0xb8] sm:$0xff]
  %v551 = vld [vmem:[%s2 + $0xc0] sm:$0xff]
  %v552 = vld [vmem:[%s2 + $0xc8] sm:$0xff]
  %v553 = vld [vmem:[%s2 + $0xd0] sm:$0xff]
  %v554 = vld [vmem:[%s2 + $0xd8] sm:$0xff]
  %v555 = vld [vmem:[%s2 + $0xe0] sm:$0xff]
  %v556 = vld [vmem:[%s2 + $0xe8] sm:$0xff]
  %v557 = vld [vmem:[%s2 + $0xf0] sm:$0xff]
  %v558 = vld [vmem:[%s2 + $0xf8] sm:$0xff]
  %v559 = vld [vmem:[%s2 + $0x100] sm:$0xff]
  %v560 = vld [vmem:[%s2 + $0x108] sm:$0xff]
  %v561 = vld [vmem:[%s2 + $0x110] sm:$0xff]
  %v562 = vld [vmem:[%s2 + $0x118] sm:$0xff]
  %v563 = vld [vmem:[%s2 + $0x120] sm:$0xff]
  %v564 = vld [vmem:[%s2 + $0x128] sm:$0xff]
  %v565 = vld [vmem:[%s2 + $0x130] sm:$0xff]
  %v566 = vld [vmem:[%s2 + $0x138] sm:$0xff]
  %v567 = vld [vmem:[%s2 + $0x140] sm:$0xff]
  %v568 = vld [vmem:[%s2 + $0x148] sm:$0xff]
  %v569 = vld [vmem:[%s2 + $0x150] sm:$0xff]
  %v570 = vld [vmem:[%s2 + $0x158] sm:$0xff]
  %v571 = vpack.c.bf16 %v502, %v500
  %v572 = vpack.c.bf16 %v507, %v505
  %v573 = vpack.c.bf16 %v512, %v510
  %v574 = vpack.c.bf16 %v517, %v515
  %v575 = vpack.c.bf16 %v522, %v520
  %v576 = vpack.c.bf16 %v527, %v525
  %v577 = vpack.c.bf16 %v532, %v530
  %v578 = vpack.c.bf16 %v537, %v535
  %v611 = vunpack.c.l.b16 %v539
  %v612 = vunpack.c.h.b16 %v539
  %v613 = vunpack.c.l.b16 %v540
  %v614 = vunpack.c.h.b16 %v540
  %v615 = vunpack.c.l.b16 %v541
  %v616 = vunpack.c.h.b16 %v541
  %v617 = vunpack.c.l.b16 %v542
  %v618 = vunpack.c.h.b16 %v542
  %v619 = vunpack.c.l.b16 %v543
  %v620 = vunpack.c.h.b16 %v543
  %v621 = vunpack.c.l.b16 %v544
  %v622 = vunpack.c.h.b16 %v544
  %v623 = vunpack.c.l.b16 %v545
  %v624 = vunpack.c.h.b16 %v545
  %v625 = vunpack.c.l.b16 %v546
  %v626 = vunpack.c.h.b16 %v546
  %v627 = vunpack.c.l.b16 %v547
  %v628 = vunpack.c.h.b16 %v547
  %v629 = vunpack.c.l.b16 %v548
  %v630 = vunpack.c.h.b16 %v548
  %v631 = vunpack.c.l.b16 %v549
  %v632 = vunpack.c.h.b16 %v549
  %v633 = vunpack.c.l.b16 %v550
  %v634 = vunpack.c.h.b16 %v550
  %v635 = vunpack.c.l.b16 %v551
  %v636 = vunpack.c.h.b16 %v551
  %v637 = vunpack.c.l.b16 %v552
  %v638 = vunpack.c.h.b16 %v552
  %v639 = vunpack.c.l.b16 %v553
  %v640 = vunpack.c.h.b16 %v553
  %v641 = vunpack.c.l.b16 %v554
  %v642 = vunpack.c.h.b16 %v554
  %v643 = vunpack.c.l.b16 %v555
  %v644 = vunpack.c.h.b16 %v555
  %v645 = vunpack.c.l.b16 %v556
  %v646 = vunpack.c.h.b16 %v556
  %v647 = vunpack.c.l.b16 %v557
  %v648 = vunpack.c.h.b16 %v557
  %v649 = vunpack.c.l.b16 %v558
  %v650 = vunpack.c.h.b16 %v558
  %v651 = vunpack.c.l.b16 %v559
  %v652 = vunpack.c.h.b16 %v559
  %v653 = vunpack.c.l.b16 %v560
  %v654 = vunpack.c.h.b16 %v560
  %v655 = vunpack.c.l.b16 %v561
  %v656 = vunpack.c.h.b16 %v561
  %v657 = vunpack.c.l.b16 %v562
  %v658 = vunpack.c.h.b16 %v562
  %v659 = vunpack.c.l.b16 %v563
  %v660 = vunpack.c.h.b16 %v563
  %v661 = vunpack.c.l.b16 %v564
  %v662 = vunpack.c.h.b16 %v564
  %v663 = vunpack.c.l.b16 %v565
  %v664 = vunpack.c.h.b16 %v565
  %v665 = vunpack.c.l.b16 %v566
  %v666 = vunpack.c.h.b16 %v566
  %v667 = vunpack.c.l.b16 %v567
  %v668 = vunpack.c.h.b16 %v567
  %v669 = vunpack.c.l.b16 %v568
  %v670 = vunpack.c.h.b16 %v568
  %v671 = vunpack.c.l.b16 %v569
  %v672 = vunpack.c.h.b16 %v569
  %v673 = vunpack.c.l.b16 %v570
  %v674 = vunpack.c.h.b16 %v570
  %v675 = vpack.c.b16 %v615, %v611
  %v676 = vpack.c.b16 %v616, %v612
  %v677 = vpack.c.b16 %v617, %v613
  %v678 = vpack.c.b16 %v618, %v614
  %v679 = vpack.c.b16 %v623, %v619
  %v680 = vpack.c.b16 %v624, %v620
  %v681 = vpack.c.b16 %v625, %v621
  %v682 = vpack.c.b16 %v626, %v622
  %v683 = vpack.c.b16 %v631, %v627
  %v684 = vpack.c.b16 %v632, %v628
  %v685 = vpack.c.b16 %v633, %v629
  %v686 = vpack.c.b16 %v634, %v630
  %v687 = vpack.c.b16 %v639, %v635
  %v688 = vpack.c.b16 %v640, %v636
  %v689 = vpack.c.b16 %v641, %v637
  %v690 = vpack.c.b16 %v642, %v638
  %v691 = vpack.c.b16 %v647, %v643
  %v692 = vpack.c.b16 %v648, %v644
  %v693 = vpack.c.b16 %v649, %v645
  %v694 = vpack.c.b16 %v650, %v646
  %v695 = vpack.c.b16 %v655, %v651
  %v696 = vpack.c.b16 %v656, %v652
  %v697 = vpack.c.b16 %v657, %v653
  %v698 = vpack.c.b16 %v658, %v654
  %v699 = vpack.c.b16 %v663, %v659
  %v700 = vpack.c.b16 %v664, %v660
  %v701 = vpack.c.b16 %v665, %v661
  %v702 = vpack.c.b16 %v666, %v662
  %v703 = vpack.c.b16 %v671, %v667
  %v704 = vpack.c.b16 %v672, %v668
  %v705 = vpack.c.b16 %v673, %v669
  %v706 = vpack.c.b16 %v674, %v670
  %739 = vmatpush.bf16.msra.mxu0 %v703
  %740 = vmatpush.bf16.msra.mxu0 %v699
  %741 = vmatpush.bf16.msra.mxu0 %v695
  %742 = vmatpush.bf16.msra.mxu0 %v691
  %743 = vmatpush.bf16.msra.mxu0 %v687
  %744 = vmatpush.bf16.msra.mxu0 %v683
  %745 = vmatpush.bf16.msra.mxu0 %v679
  %746 = vmatpush.bf16.msra.mxu0 %v675
  %747 = vmatmul.bf16.gmra.mxu0 %v571
  %v748 = vpop.f32.mrf.mxu0
  %v749 = vadd.f32 0.0, %v748
  %v750 = vpop.f32.mrf.mxu0
  %v751 = vadd.f32 0.0, %v750
  %752 = vmatmul.bf16.gmra.mxu0 %v572
  %v753 = vpop.f32.mrf.mxu0
  %v754 = vadd.f32 0.0, %v753
  %v755 = vpop.f32.mrf.mxu0
  %v756 = vadd.f32 0.0, %v755
  %757 = vmatmul.bf16.gmra.mxu0 %v573
  %v758 = vpop.f32.mrf.mxu0
  %v759 = vpop.f32.mrf.mxu0
  %760 = vmatmul.bf16.gmra.mxu0 %v574
  %v761 = vpop.f32.mrf.mxu0
  %v762 = vpop.f32.mrf.mxu0
  %763 = vmatmul.bf16.gmra.mxu0 %v575
  %v764 = vpop.f32.mrf.mxu0
  %v765 = vpop.f32.mrf.mxu0
  %766 = vmatmul.bf16.gmra.mxu0 %v576
  %v767 = vpop.f32.mrf.mxu0
  %v768 = vpop.f32.mrf.mxu0
  %769 = vmatmul.bf16.gmra.mxu0 %v577
  %v770 = vpop.f32.mrf.mxu0
  %v771 = vpop.f32.mrf.mxu0
  %772 = vmatmul.bf16.gmra.mxu0 %v578
  %v773 = vpop.f32.mrf.mxu0
  %v774 = vpop.f32.mrf.mxu0
  %775 = vdwg.mxu0
  %776 = vmatpush.bf16.msra.mxu0 %v704
  %777 = vmatpush.bf16.msra.mxu0 %v700
  %778 = vmatpush.bf16.msra.mxu0 %v696
  %779 = vmatpush.bf16.msra.mxu0 %v692
  %780 = vmatpush.bf16.msra.mxu0 %v688
  %781 = vmatpush.bf16.msra.mxu0 %v684
  %782 = vmatpush.bf16.msra.mxu0 %v680
  %783 = vmatpush.bf16.msra.mxu0 %v676
  %784 = vmatmul.bf16.gmra.mxu0 %v571
  %v785 = vpop.f32.mrf.mxu0
  %v786 = vpop.f32.mrf.mxu0
  %787 = vmatmul.bf16.gmra.mxu0 %v572
  %v788 = vpop.f32.mrf.mxu0
  %v789 = vpop.f32.mrf.mxu0
  %790 = vmatmul.bf16.gmra.mxu0 %v573
  %v791 = vpop.f32.mrf.mxu0
  %v792 = vadd.f32 0.0, %v791
  %v793 = vpop.f32.mrf.mxu0
  %v794 = vadd.f32 0.0, %v793
  %795 = vmatmul.bf16.gmra.mxu0 %v574
  %v796 = vpop.f32.mrf.mxu0
  %v797 = vadd.f32 0.0, %v796
  %v798 = vpop.f32.mrf.mxu0
  %v799 = vadd.f32 0.0, %v798
  %800 = vmatmul.bf16.gmra.mxu0 %v575
  %v801 = vpop.f32.mrf.mxu0
  %v802 = vpop.f32.mrf.mxu0
  %803 = vmatmul.bf16.gmra.mxu0 %v576
  %v804 = vpop.f32.mrf.mxu0
  %v805 = vpop.f32.mrf.mxu0
  %806 = vmatmul.bf16.gmra.mxu0 %v577
  %v807 = vpop.f32.mrf.mxu0
  %v808 = vpop.f32.mrf.mxu0
  %809 = vmatmul.bf16.gmra.mxu0 %v578
  %v810 = vpop.f32.mrf.mxu0
  %v811 = vpop.f32.mrf.mxu0
  %812 = vdwg.mxu0
  %813 = vmatpush.bf16.msra.mxu0 %v705
  %814 = vmatpush.bf16.msra.mxu0 %v701
  %815 = vmatpush.bf16.msra.mxu0 %v697
  %816 = vmatpush.bf16.msra.mxu0 %v693
  %817 = vmatpush.bf16.msra.mxu0 %v689
  %818 = vmatpush.bf16.msra.mxu0 %v685
  %819 = vmatpush.bf16.msra.mxu0 %v681
  %820 = vmatpush.bf16.msra.mxu0 %v677
  %821 = vmatmul.bf16.gmra.mxu0 %v571
  %v822 = vpop.f32.mrf.mxu0
  %v823 = vpop.f32.mrf.mxu0
  %824 = vmatmul.bf16.gmra.mxu0 %v572
  %v825 = vpop.f32.mrf.mxu0
  %v826 = vpop.f32.mrf.mxu0
  %827 = vmatmul.bf16.gmra.mxu0 %v573
  %v828 = vpop.f32.mrf.mxu0
  %v829 = vpop.f32.mrf.mxu0
  %830 = vmatmul.bf16.gmra.mxu0 %v574
  %v831 = vpop.f32.mrf.mxu0
  %v832 = vpop.f32.mrf.mxu0
  %833 = vmatmul.bf16.gmra.mxu0 %v575
  %v834 = vpop.f32.mrf.mxu0
  %v835 = vadd.f32 0.0, %v834
  %v836 = vpop.f32.mrf.mxu0
  %v837 = vadd.f32 0.0, %v836
  %838 = vmatmul.bf16.gmra.mxu0 %v576
  %v839 = vpop.f32.mrf.mxu0
  %v840 = vadd.f32 0.0, %v839
  %v841 = vpop.f32.mrf.mxu0
  %v842 = vadd.f32 0.0, %v841
  %843 = vmatmul.bf16.gmra.mxu0 %v577
  %v844 = vpop.f32.mrf.mxu0
  %v845 = vpop.f32.mrf.mxu0
  %846 = vmatmul.bf16.gmra.mxu0 %v578
  %v847 = vpop.f32.mrf.mxu0
  %v848 = vpop.f32.mrf.mxu0
  %849 = vdwg.mxu0
  %850 = vmatpush.bf16.msra.mxu0 %v706
  %851 = vmatpush.bf16.msra.mxu0 %v702
  %852 = vmatpush.bf16.msra.mxu0 %v698
  %853 = vmatpush.bf16.msra.mxu0 %v694
  %854 = vmatpush.bf16.msra.mxu0 %v690
  %855 = vmatpush.bf16.msra.mxu0 %v686
  %856 = vmatpush.bf16.msra.mxu0 %v682
  %857 = vmatpush.bf16.msra.mxu0 %v678
  %858 = vmatmul.bf16.gmra.mxu0 %v571
  %v859 = vpop.f32.mrf.mxu0
  %v860 = vpop.f32.mrf.mxu0
  %861 = vmatmul.bf16.gmra.mxu0 %v572
  %v862 = vpop.f32.mrf.mxu0
  %v863 = vpop.f32.mrf.mxu0
  %864 = vmatmul.bf16.gmra.mxu0 %v573
  %v865 = vpop.f32.mrf.mxu0
  %v866 = vpop.f32.mrf.mxu0
  %867 = vmatmul.bf16.gmra.mxu0 %v574
  %v868 = vpop.f32.mrf.mxu0
  %v869 = vpop.f32.mrf.mxu0
  %870 = vmatmul.bf16.gmra.mxu0 %v575
  %v871 = vpop.f32.mrf.mxu0
  %v872 = vpop.f32.mrf.mxu0
  %873 = vmatmul.bf16.gmra.mxu0 %v576
  %v874 = vpop.f32.mrf.mxu0
  %v875 = vpop.f32.mrf.mxu0
  %876 = vmatmul.bf16.gmra.mxu0 %v577
  %v877 = vpop.f32.mrf.mxu0
  %v878 = vadd.f32 0.0, %v877
  %v879 = vpop.f32.mrf.mxu0
  %v880 = vadd.f32 0.0, %v879
  %881 = vmatmul.bf16.gmra.mxu0 %v578
  %v882 = vpop.f32.mrf.mxu0
  %v883 = vadd.f32 0.0, %v882
  %v884 = vpop.f32.mrf.mxu0
  %v885 = vadd.f32 0.0, %v884
  %886 = vdwg.mxu0
  %v887 = vadd.f32 %v749, %v792
  %v888 = vadd.f32 %v751, %v794
  %v889 = vadd.f32 %v754, %v797
  %v890 = vadd.f32 %v756, %v799
  %v891 = vadd.f32 %v887, %v835
  %v892 = vadd.f32 %v888, %v837
  %v893 = vadd.f32 %v889, %v840
  %v894 = vadd.f32 %v890, %v842
  %v895 = vadd.f32 %v891, %v878
  %v896 = vadd.f32 %v892, %v880
  %v897 = vadd.f32 %v893, %v883
  %v898 = vadd.f32 %v894, %v885
  %v899 = vperm.slane %v18, 1
  %v900 = vadd.f32 %v895, %v899
  %v901 = vadd.f32 %v896, %v899
  %v902 = vadd.f32 %v897, %v899
  %v903 = vadd.f32 %v898, %v899
  %v904 = vmax.f32 %v900, 0.0
  %v905 = vmax.f32 %v901, 0.0
  %v906 = vmax.f32 %v902, 0.0
  %v907 = vmax.f32 %v903, 0.0
  %v908 = vmax.f32 %v904, %v905
  %v909 = vmax.f32 %v906, %v907
  %v910 = vmax.f32 %v908, %v909
  %v911 = vld [vmem:[%s2 + $0x160] sm:$0xff]
  %v912 = vld [vmem:[%s2 + $0x168] sm:$0xff]
  %v913 = vld [vmem:[%s2 + $0x170] sm:$0xff]
  %v914 = vld [vmem:[%s2 + $0x178] sm:$0xff]
  %v915 = vld [vmem:[%s2 + $0x180] sm:$0xff]
  %v916 = vld [vmem:[%s2 + $0x188] sm:$0xff]
  %v917 = vld [vmem:[%s2 + $0x190] sm:$0xff]
  %v918 = vld [vmem:[%s2 + $0x198] sm:$0xff]
  %v919 = vld [vmem:[%s2 + $0x1a0] sm:$0xff]
  %v920 = vld [vmem:[%s2 + $0x1a8] sm:$0xff]
  %v921 = vld [vmem:[%s2 + $0x1b0] sm:$0xff]
  %v922 = vld [vmem:[%s2 + $0x1b8] sm:$0xff]
  %v923 = vld [vmem:[%s2 + $0x1c0] sm:$0xff]
  %v924 = vld [vmem:[%s2 + $0x1c8] sm:$0xff]
  %v925 = vld [vmem:[%s2 + $0x1d0] sm:$0xff]
  %v926 = vld [vmem:[%s2 + $0x1d8] sm:$0xff]
  %v927 = vld [vmem:[%s2 + $0x1e0] sm:$0xff]
  %v928 = vld [vmem:[%s2 + $0x1e8] sm:$0xff]
  %v929 = vld [vmem:[%s2 + $0x1f0] sm:$0xff]
  %v930 = vld [vmem:[%s2 + $0x1f8] sm:$0xff]
  %v931 = vld [vmem:[%s2 + $0x200] sm:$0xff]
  %v932 = vld [vmem:[%s2 + $0x208] sm:$0xff]
  %v933 = vld [vmem:[%s2 + $0x210] sm:$0xff]
  %v934 = vld [vmem:[%s2 + $0x218] sm:$0xff]
  %v935 = vld [vmem:[%s2 + $0x220] sm:$0xff]
  %v936 = vld [vmem:[%s2 + $0x228] sm:$0xff]
  %v937 = vld [vmem:[%s2 + $0x230] sm:$0xff]
  %v938 = vld [vmem:[%s2 + $0x238] sm:$0xff]
  %v939 = vld [vmem:[%s2 + $0x240] sm:$0xff]
  %v940 = vld [vmem:[%s2 + $0x248] sm:$0xff]
  %v941 = vld [vmem:[%s2 + $0x250] sm:$0xff]
  %v942 = vld [vmem:[%s2 + $0x258] sm:$0xff]
  %v943 = vpack.c.bf16 %v910, %v910
  %v976 = vunpack.c.l.b16 %v911
  %v977 = vunpack.c.h.b16 %v911
  %v978 = vunpack.c.l.b16 %v912
  %v979 = vunpack.c.h.b16 %v912
  %v980 = vunpack.c.l.b16 %v913
  %v981 = vunpack.c.h.b16 %v913
  %v982 = vunpack.c.l.b16 %v914
  %v983 = vunpack.c.h.b16 %v914
  %v984 = vunpack.c.l.b16 %v915
  %v985 = vunpack.c.h.b16 %v915
  %v986 = vunpack.c.l.b16 %v916
  %v987 = vunpack.c.h.b16 %v916
  %v988 = vunpack.c.l.b16 %v917
  %v989 = vunpack.c.h.b16 %v917
  %v990 = vunpack.c.l.b16 %v918
  %v991 = vunpack.c.h.b16 %v918
  %v992 = vunpack.c.l.b16 %v919
  %v993 = vunpack.c.h.b16 %v919
  %v994 = vunpack.c.l.b16 %v920
  %v995 = vunpack.c.h.b16 %v920
  %v996 = vunpack.c.l.b16 %v921
  %v997 = vunpack.c.h.b16 %v921
  %v998 = vunpack.c.l.b16 %v922
  %v999 = vunpack.c.h.b16 %v922
  %v1000 = vunpack.c.l.b16 %v923
  %v1001 = vunpack.c.h.b16 %v923
  %v1002 = vunpack.c.l.b16 %v924
  %v1003 = vunpack.c.h.b16 %v924
  %v1004 = vunpack.c.l.b16 %v925
  %v1005 = vunpack.c.h.b16 %v925
  %v1006 = vunpack.c.l.b16 %v926
  %v1007 = vunpack.c.h.b16 %v926
  %v1008 = vunpack.c.l.b16 %v927
  %v1009 = vunpack.c.h.b16 %v927
  %v1010 = vunpack.c.l.b16 %v928
  %v1011 = vunpack.c.h.b16 %v928
  %v1012 = vunpack.c.l.b16 %v929
  %v1013 = vunpack.c.h.b16 %v929
  %v1014 = vunpack.c.l.b16 %v930
  %v1015 = vunpack.c.h.b16 %v930
  %v1016 = vunpack.c.l.b16 %v931
  %v1017 = vunpack.c.h.b16 %v931
  %v1018 = vunpack.c.l.b16 %v932
  %v1019 = vunpack.c.h.b16 %v932
  %v1020 = vunpack.c.l.b16 %v933
  %v1021 = vunpack.c.h.b16 %v933
  %v1022 = vunpack.c.l.b16 %v934
  %v1023 = vunpack.c.h.b16 %v934
  %v1024 = vunpack.c.l.b16 %v935
  %v1025 = vunpack.c.h.b16 %v935
  %v1026 = vunpack.c.l.b16 %v936
  %v1027 = vunpack.c.h.b16 %v936
  %v1028 = vunpack.c.l.b16 %v937
  %v1029 = vunpack.c.h.b16 %v937
  %v1030 = vunpack.c.l.b16 %v938
  %v1031 = vunpack.c.h.b16 %v938
  %v1032 = vunpack.c.l.b16 %v939
  %v1033 = vunpack.c.h.b16 %v939
  %v1034 = vunpack.c.l.b16 %v940
  %v1035 = vunpack.c.h.b16 %v940
  %v1036 = vunpack.c.l.b16 %v941
  %v1037 = vunpack.c.h.b16 %v941
  %v1038 = vunpack.c.l.b16 %v942
  %v1039 = vunpack.c.h.b16 %v942
  %v1040 = vpack.c.b16 %v980, %v976
  %v1041 = vpack.c.b16 %v981, %v977
  %v1042 = vpack.c.b16 %v982, %v978
  %v1043 = vpack.c.b16 %v983, %v979
  %v1044 = vpack.c.b16 %v988, %v984
  %v1045 = vpack.c.b16 %v989, %v985
  %v1046 = vpack.c.b16 %v990, %v986
  %v1047 = vpack.c.b16 %v991, %v987
  %v1048 = vpack.c.b16 %v996, %v992
  %v1049 = vpack.c.b16 %v997, %v993
  %v1050 = vpack.c.b16 %v998, %v994
  %v1051 = vpack.c.b16 %v999, %v995
  %v1052 = vpack.c.b16 %v1004, %v1000
  %v1053 = vpack.c.b16 %v1005, %v1001
  %v1054 = vpack.c.b16 %v1006, %v1002
  %v1055 = vpack.c.b16 %v1007, %v1003
  %v1056 = vpack.c.b16 %v1012, %v1008
  %v1057 = vpack.c.b16 %v1013, %v1009
  %v1058 = vpack.c.b16 %v1014, %v1010
  %v1059 = vpack.c.b16 %v1015, %v1011
  %v1060 = vpack.c.b16 %v1020, %v1016
  %v1061 = vpack.c.b16 %v1021, %v1017
  %v1062 = vpack.c.b16 %v1022, %v1018
  %v1063 = vpack.c.b16 %v1023, %v1019
  %v1064 = vpack.c.b16 %v1028, %v1024
  %v1065 = vpack.c.b16 %v1029, %v1025
  %v1066 = vpack.c.b16 %v1030, %v1026
  %v1067 = vpack.c.b16 %v1031, %v1027
  %v1068 = vpack.c.b16 %v1036, %v1032
  %v1069 = vpack.c.b16 %v1037, %v1033
  %v1070 = vpack.c.b16 %v1038, %v1034
  %v1071 = vpack.c.b16 %v1039, %v1035
  %1104 = vmatpush.bf16.msra.mxu0 %v1068
  %1105 = vmatpush.bf16.msra.mxu0 %v1064
  %1106 = vmatpush.bf16.msra.mxu0 %v1060
  %1107 = vmatpush.bf16.msra.mxu0 %v1056
  %1108 = vmatpush.bf16.msra.mxu0 %v1052
  %1109 = vmatpush.bf16.msra.mxu0 %v1048
  %1110 = vmatpush.bf16.msra.mxu0 %v1044
  %1111 = vmatpush.bf16.msra.mxu0 %v1040
  %1112 = vmatmul.bf16.gmra.mxu0 %v943
  %v1113 = vpop.f32.mrf.mxu0
  %v1114 = vadd.f32 0.0, %v1113
  %v1115 = vpop.f32.mrf.mxu0
  %1116 = vdwg.mxu0
  %1117 = vmatpush.bf16.msra.mxu0 %v1069
  %1118 = vmatpush.bf16.msra.mxu0 %v1065
  %1119 = vmatpush.bf16.msra.mxu0 %v1061
  %1120 = vmatpush.bf16.msra.mxu0 %v1057
  %1121 = vmatpush.bf16.msra.mxu0 %v1053
  %1122 = vmatpush.bf16.msra.mxu0 %v1049
  %1123 = vmatpush.bf16.msra.mxu0 %v1045
  %1124 = vmatpush.bf16.msra.mxu0 %v1041
  %1125 = vmatmul.bf16.gmra.mxu0 %v943
  %v1126 = vpop.f32.mrf.mxu0
  %v1127 = vadd.f32 0.0, %v1126
  %v1128 = vpop.f32.mrf.mxu0
  %1129 = vdwg.mxu0
  %1130 = vmatpush.bf16.msra.mxu0 %v1070
  %1131 = vmatpush.bf16.msra.mxu0 %v1066
  %1132 = vmatpush.bf16.msra.mxu0 %v1062
  %1133 = vmatpush.bf16.msra.mxu0 %v1058
  %1134 = vmatpush.bf16.msra.mxu0 %v1054
  %1135 = vmatpush.bf16.msra.mxu0 %v1050
  %1136 = vmatpush.bf16.msra.mxu0 %v1046
  %1137 = vmatpush.bf16.msra.mxu0 %v1042
  %1138 = vmatmul.bf16.gmra.mxu0 %v943
  %v1139 = vpop.f32.mrf.mxu0
  %v1140 = vadd.f32 0.0, %v1139
  %v1141 = vpop.f32.mrf.mxu0
  %1142 = vdwg.mxu0
  %1143 = vmatpush.bf16.msra.mxu0 %v1071
  %1144 = vmatpush.bf16.msra.mxu0 %v1067
  %1145 = vmatpush.bf16.msra.mxu0 %v1063
  %1146 = vmatpush.bf16.msra.mxu0 %v1059
  %1147 = vmatpush.bf16.msra.mxu0 %v1055
  %1148 = vmatpush.bf16.msra.mxu0 %v1051
  %1149 = vmatpush.bf16.msra.mxu0 %v1047
  %1150 = vmatpush.bf16.msra.mxu0 %v1043
  %1151 = vmatmul.bf16.gmra.mxu0 %v943
  %v1152 = vpop.f32.mrf.mxu0
  %v1153 = vadd.f32 0.0, %v1152
  %v1154 = vpop.f32.mrf.mxu0
  %1155 = vdwg.mxu0
  %v1157 = vrot.slane %v1127, 2
  %v1159 = vadd.f32 %v1114, %v1157
  %v1161 = vrot.slane %v1140, 4
  %v1163 = vadd.f32 %v1159, %v1161
  %v1165 = vrot.slane %v1153, 6
  %v1167 = vadd.f32 %v1163, %v1165
  %v1168 = vperm.slane %v18, 2
  %v1169 = vadd.f32 %v1167, %v1168
  %v1170 = vmax.f32 %v1169, 0.0
  %v1171 = vperm.slane %v18, 3
  %v1172 = vmul.f32 %v1170, %v1171
  %v1173 = vsel %vm147, %v1172, 0.0
  %1174 = vadd.xlane.f32.xlu0 %v1173
  %v1175 = vpop.xlane.xlu0 %1174
  %v1176 = vperm.slane %v18, 4
  %v1177 = vadd.f32 %v1175, %v1176
  %v1178 = vsub.f32 %v1177, %v1177
  %v1179 = vmul.f32 %v1178, 1.442695
  %v1180 = vpow.pop %v1179
  %v1181 = vadd.f32 %v1180, 0.0
  %v1182 = vrcp.pop %v1181
  %v1183 = vmul.f32 %v1181, %v1182
  %v1184 = vsub.f32 1.0, %v1183
  %v1185 = vmul.f32 %v1182, %v1184
  %v1186 = vadd.f32 %v1182, %v1185
  %vm1187 = vweird.f32 %v1181
  %vm1188 = vweird.f32 %v1182
  %vm1189 = vmor %vm1187, %vm1188
  %v1190 = vsel %vm1189, %v1182, %v1186
  %v1191 = vand.u32 2147483647, %v1181
  %vm1192 = vcmp.eq.f32.partialorder %v1191, 8.507059e+37
  %v1193 = vand.u32 %v1181, 2147483648
  %v1194 = vor.u32 1.1754944e-38, %v1193
  %v1195 = vsel %vm1192, %v1194, %v1190
  %v1196 = vmul.f32 %v1180, %v1195
  %1198 = vset.pattern.permute.xlu0 0
  %1199 = vperm.xlu0 %1198, %v1196
  %v1200 = vpop.permute.xlu0 %1199
  %1202 = vst [vmem:[%s4] sm:$0x3] %v1200
  // Predicated region
  $region18: #{mlp_ae_forward.1} parent=0 // pred_check
    _
  $region19: #{mlp_ae_forward.1} parent=0 // pred_check_branch
    %1204 = sbr.rel (0) target = $region21
  $region20: #{mlp_ae_forward.1} parent=0 // pred_region
    _
  $region21: #{mlp_ae_forward.1} parent=0 // pred_fallthru
    _
  // Predicated region
  $region22: #{mlp_ae_forward.1} parent=0 // pred_check
    _
  $region23: #{mlp_ae_forward.1} parent=0 // pred_check_branch
    %1206 = sbr.rel (0) target = $region25
  $region24: #{mlp_ae_forward.1} parent=0 // pred_region
    _
  $region25: #{mlp_ae_forward.1} parent=0 // pred_fallthru
    _

</llo_original>
